<compile_context>
chip_gen: v5e
topology: v5e:2x2
jax: 0.10.0
libtpu: 0.0.40
codegen_flags: <defaults>
</compile_context>

<pallas_src>
import functools

import jax
import jax.numpy as jnp
from jax import lax
from jax.experimental import pallas as pl
from jax.experimental.pallas import tpu as pltpu

EMB_DIM = 32
MLP_H1, MLP_H2, MLP_H3 = 32, 16, 8


def _round_up(x, m):
    return ((x + m - 1) // m) * m


def neumf_kernel(u_ref, i_ref,
                 w1u_ref, w1i_ref, b1_ref, w2_ref, b2_ref, w3_ref, b3_ref,
                 wog_ref, wom_ref, bo_ref,
                 out_ref):
    f32 = jnp.float32
    # Contract the packed-feature axis of both operands: (o, k) x (b, k) -> (o, b).
    dn = (((1,), (1,)), ((), ()))

    u = u_ref[...]                    # (TB, 64) = [gmf_u || mlp_u], compute dtype
    i = i_ref[...]                    # (TB, 64) = [gmf_i || mlp_i]

    # --- GMF head with wog folded in up-front. ---------------------------------
    # p = u * i elementwise (the mlp half of the product is annihilated by the
    # zeros in wog_ext), then a (1, 64) x (TB, 64)^T MXU contraction gives the
    # lane-dense (1, TB) GMF logit directly; no (32, TB) tensor stays live.
    p = u * i
    logit = lax.dot_general(wog_ref[...], p, dn, preferred_element_type=f32)  # (1, TB)

    # --- MLP branch, (feature, batch) orientation via transposed contractions. -
    # First layer: split K=64 matmuls against the packed blocks (weights are
    # zero over the gmf half), equivalent to W1 @ concat(mlp_u, mlp_i)^T.
    h = (lax.dot_general(w1u_ref[...], u, dn, preferred_element_type=f32)
         + lax.dot_general(w1i_ref[...], i, dn, preferred_element_type=f32)
         + b1_ref[...])                                            # (32, TB)
    h = jnp.maximum(h, 0.0)

    h = jnp.dot(w2_ref[...], h.astype(w2_ref.dtype),
                preferred_element_type=f32) + b2_ref[...]          # (16, TB)
    h = jnp.maximum(h, 0.0)

    h = jnp.dot(w3_ref[...], h.astype(w3_ref.dtype),
                preferred_element_type=f32) + b3_ref[...]          # (8, TB)
    h = jnp.maximum(h, 0.0)

    # --- Output head: VPU multiply + sublane (XLU) reduce, add GMF + bias. -----
    logit = logit + jnp.sum(h * wom_ref[...], axis=0, keepdims=True) + bo_ref[...]
    out_ref[...] = jax.nn.sigmoid(logit)                           # (1, TB), lane-dense


def neumf_forward(user, item, params, *, tile_b=None,
                  compute_dtype=jnp.bfloat16):
    """user, item: int arrays of shape (B, 1) (or (B,)). Returns (B,) probs.

    compute_dtype=bfloat16 (default) halves HBM traffic on the activation
    stream; accumulation, biases and the output head stay in float32.
    """
    user = jnp.asarray(user).reshape(-1).astype(jnp.int32)
    item = jnp.asarray(item).reshape(-1).astype(jnp.int32)
    B = int(user.shape[0])
    cd = compute_dtype
    cd_bytes = jnp.dtype(cd).itemsize

    # Batch tile: lane-dense multiple of 128, sized so per-step overhead is
    # amortized but VMEM stays a few MiB on every generation (v5e scoped
    # default 16 MiB).  For large batches keep >= 2 grid steps so the
    # "parallel" axis can shard across v7x's two TensorCores.
    if tile_b is None:
        cap = 8192 if cd_bytes <= 2 else 4096
        if B >= 256:
            want = _round_up(-(-B // 2), 128)   # ceil(B/2), rounded to lanes
        else:
            want = _round_up(B, 128)
        tile_b = max(128, min(cap, want))
    assert tile_b % 128 == 0, "tile_b must be a multiple of 128 (lane width)"

    Bp = _round_up(B, tile_b)
    if Bp != B:
        pad = Bp - B
        user = jnp.pad(user, (0, pad))   # padded rows reuse index 0; sliced off
        item = jnp.pad(item, (0, pad))

    E = EMB_DIM

    # --- glue: ONE packed gather per side, row-major, no host transposes. ------
    # TODO(synk): fuse these gathers into the kernel via scalar-prefetched
    # indices + pl.ANY tables + per-tile DMA gather for the last ~2x of HBM.
    u_blk = jnp.take(params["user_emb"], user, axis=0).astype(cd)   # (Bp, 64)
    i_blk = jnp.take(params["item_emb"], item, axis=0).astype(cd)   # (Bp, 64)

    # Weights (PyTorch (out, in) layout).  First-layer halves are padded to
    # K=64 (zeros over the gmf columns) so they contract against the packed
    # activation blocks directly; wog is padded with zeros over the mlp half.
    w1 = params["w1"]                                              # (32, 64)
    zeros_g = jnp.zeros((MLP_H1, E), w1.dtype)
    w1u = jnp.concatenate([zeros_g, w1[:, :E]], axis=1).astype(cd)  # (32, 64)
    w1i = jnp.concatenate([zeros_g, w1[:, E:]], axis=1).astype(cd)  # (32, 64)
    w2 = params["w2"].astype(cd)                                    # (16, 32)
    w3 = params["w3"].astype(cd)                                    # (8, 16)
    b1 = params["b1"].reshape(MLP_H1, 1).astype(jnp.float32)
    b2 = params["b2"].reshape(MLP_H2, 1).astype(jnp.float32)
    b3 = params["b3"].reshape(MLP_H3, 1).astype(jnp.float32)
    wo = params["wo"]                                               # (1, 40)
    wog = jnp.concatenate([wo[:, :E], jnp.zeros((1, E), wo.dtype)],
                          axis=1).astype(cd)                        # (1, 64)
    wom = wo[:, E:].reshape(MLP_H3, 1).astype(jnp.float32)          # (8, 1)
    bo = params["bo"].reshape(1, 1).astype(jnp.float32)

    def act_spec():
        return pl.BlockSpec((tile_b, 2 * E), lambda i: (i, 0))

    def full_spec(arr):
        # whole (tiny) array resident in VMEM across all grid steps
        return pl.BlockSpec(arr.shape, lambda i: (0,) * arr.ndim)

    grid = (Bp // tile_b,)
    out = pl.pallas_call(
        neumf_kernel,
        out_shape=jax.ShapeDtypeStruct((1, Bp), jnp.float32),
        grid_spec=pltpu.PrefetchScalarGridSpec(
            num_scalar_prefetch=0,
            grid=grid,
            in_specs=[
                act_spec(), act_spec(),
                full_spec(w1u), full_spec(w1i), full_spec(b1),
                full_spec(w2), full_spec(b2),
                full_spec(w3), full_spec(b3),
                full_spec(wog), full_spec(wom), full_spec(bo),
            ],
            out_specs=pl.BlockSpec((1, tile_b), lambda i: (0, i)),
        ),
        compiler_params=pltpu.CompilerParams(
            dimension_semantics=("parallel",)),
    )(u_blk, i_blk, w1u, w1i, b1, w2, b2, w3, b3, wog, wom, bo)

    return out[0, :B]


def init_params(key, num_users, num_items, emb_dim=EMB_DIM):
    """Mirrors NeuMF.__init__: normal(0, 0.01) weights, zero biases.
    Embedding tables are stored PACKED per side: [:, :32] = GMF, [:, 32:] = MLP.
    Linear weights are PyTorch-style (out_features, in_features)."""
    ks = jax.random.split(key, 6)
    std = 0.01
    return {
        "user_emb": std * jax.random.normal(ks[0], (num_users, 2 * emb_dim), jnp.float32),
        "item_emb": std * jax.random.normal(ks[1], (num_items, 2 * emb_dim), jnp.float32),
        "w1": std * jax.random.normal(ks[2], (MLP_H1, 2 * emb_dim), jnp.float32),
        "b1": jnp.zeros((MLP_H1,), jnp.float32),
        "w2": std * jax.random.normal(ks[3], (MLP_H2, MLP_H1), jnp.float32),
        "b2": jnp.zeros((MLP_H2,), jnp.float32),
        "w3": std * jax.random.normal(ks[4], (MLP_H3, MLP_H2), jnp.float32),
        "b3": jnp.zeros((MLP_H3,), jnp.float32),
        "wo": std * jax.random.normal(ks[5], (1, emb_dim + MLP_H3), jnp.float32),
        "bo": jnp.zeros((1,), jnp.float32),
    }


def neumf_reference(user, item, params):
    """Pure-JAX reference for correctness checking (PyTorch semantics)."""
    user = jnp.asarray(user).reshape(-1)
    item = jnp.asarray(item).reshape(-1)
    E = EMB_DIM
    u = jnp.take(params["user_emb"], user, axis=0)
    i = jnp.take(params["item_emb"], item, axis=0)
    gmf = u[:, :E] * i[:, :E]
    x = jnp.concatenate([u[:, E:], i[:, E:]], axis=1)
    x = jnp.maximum(x @ params["w1"].T + params["b1"], 0.0)
    x = jnp.maximum(x @ params["w2"].T + params["b2"], 0.0)
    x = jnp.maximum(x @ params["w3"].T + params["b3"], 0.0)
    cat = jnp.concatenate([gmf, x], axis=1)
    logit = cat @ params["wo"].T + params["bo"]
    return jax.nn.sigmoid(logit)[:, 0]


if __name__ == "__main__":
    key = jax.random.PRNGKey(0)
    num_users, num_items, batch = 64, 128, 8

    k_p, k_u, k_i = jax.random.split(key, 3)
    params = init_params(k_p, num_users, num_items)

    # user / item index tensors of shape (B, 1), matching the PyTorch usage
    user = jax.random.randint(k_u, (batch, 1), 0, num_users, dtype=jnp.int32)
    item = jax.random.randint(k_i, (batch, 1), 0, num_items, dtype=jnp.int32)

    ref = neumf_reference(user, item, params)

    # f32 compute path (tight, dtype-aware tolerance; MXU may run reduced
    # precision for f32 so don't demand 1e-6).
    out_f32 = neumf_forward(user, item, params, compute_dtype=jnp.float32)
    jax.block_until_ready(out_f32)
    assert out_f32.shape == (batch,), out_f32.shape
    assert jnp.allclose(out_f32, ref, atol=1e-4, rtol=1e-4), (out_f32, ref)

    # default bf16 fast path (looser tolerance vs. the f32 reference).
    out_bf16 = neumf_forward(user, item, params)
    jax.block_until_ready(out_bf16)
    assert out_bf16.shape == (batch,), out_bf16.shape
    assert jnp.allclose(out_bf16, ref, atol=2e-2, rtol=2e-2), (out_bf16, ref)

    print("KERNEL_OK")
</pallas_src>

<mosaic_0001>
module attributes {stable_mosaic.version = 11 : i64} {
  func.func @neumf_kernel(%arg0: i32, %arg1: memref<128x64xf32, #tpu.memory_space<vmem>>, %arg2: memref<128x64xf32, #tpu.memory_space<vmem>>, %arg3: memref<32x64xf32, #tpu.memory_space<vmem>>, %arg4: memref<32x64xf32, #tpu.memory_space<vmem>>, %arg5: memref<32x1xf32, #tpu.memory_space<vmem>>, %arg6: memref<16x32xf32, #tpu.memory_space<vmem>>, %arg7: memref<16x1xf32, #tpu.memory_space<vmem>>, %arg8: memref<8x16xf32, #tpu.memory_space<vmem>>, %arg9: memref<8x1xf32, #tpu.memory_space<vmem>>, %arg10: memref<1x64xf32, #tpu.memory_space<vmem>>, %arg11: memref<8x1xf32, #tpu.memory_space<vmem>>, %arg12: memref<1x1xf32, #tpu.memory_space<vmem>>, %arg13: memref<1x128xf32, #tpu.memory_space<vmem>>) attributes {dimension_semantics = [#tpu.dimension_semantics<parallel>], iteration_bounds = array<i64: 1>, scalar_prefetch = 0 : i64, scratch_operands = 0 : i64, tpu.core_type = #tpu.core_type<tc>, window_params = [{transform_indices = @transform_0, window_bounds = array<i64: 128, 64>}, {transform_indices = @transform_1, window_bounds = array<i64: 128, 64>}, {pipeline_mode = #tpu.pipeline_mode<synchronous>, transform_indices = @transform_2, window_bounds = array<i64: 32, 64>}, {pipeline_mode = #tpu.pipeline_mode<synchronous>, transform_indices = @transform_3, window_bounds = array<i64: 32, 64>}, {pipeline_mode = #tpu.pipeline_mode<synchronous>, transform_indices = @transform_4, window_bounds = array<i64: 32, 1>}, {pipeline_mode = #tpu.pipeline_mode<synchronous>, transform_indices = @transform_5, window_bounds = array<i64: 16, 32>}, {pipeline_mode = #tpu.pipeline_mode<synchronous>, transform_indices = @transform_6, window_bounds = array<i64: 16, 1>}, {pipeline_mode = #tpu.pipeline_mode<synchronous>, transform_indices = @transform_7, window_bounds = array<i64: 8, 16>}, {pipeline_mode = #tpu.pipeline_mode<synchronous>, transform_indices = @transform_8, window_bounds = array<i64: 8, 1>}, {pipeline_mode = #tpu.pipeline_mode<synchronous>, transform_indices = @transform_9, window_bounds = array<i64: 1, 64>}, {pipeline_mode = #tpu.pipeline_mode<synchronous>, transform_indices = @transform_10, window_bounds = array<i64: 8, 1>}, {pipeline_mode = #tpu.pipeline_mode<synchronous>, transform_indices = @transform_11, window_bounds = array<i64: 1, 1>}, {transform_indices = @transform_12, window_bounds = array<i64: 1, 128>}]} {
    %c0 = arith.constant 0 : index
    %c0_0 = arith.constant 0 : index
    %0 = vector.load %arg1[%c0, %c0_0] : memref<128x64xf32, #tpu.memory_space<vmem>>, vector<128x64xf32>
    %c0_1 = arith.constant 0 : index
    %c0_2 = arith.constant 0 : index
    %1 = vector.load %arg2[%c0_1, %c0_2] : memref<128x64xf32, #tpu.memory_space<vmem>>, vector<128x64xf32>
    %2 = arith.mulf %0, %1 : vector<128x64xf32>
    %c0_3 = arith.constant 0 : index
    %c0_4 = arith.constant 0 : index
    %3 = vector.load %arg10[%c0_3, %c0_4] : memref<1x64xf32, #tpu.memory_space<vmem>>, vector<1x64xf32>
    %cst = arith.constant dense<0.000000e+00> : vector<1x128xf32>
    %4 = tpu.matmul %3, %2, %cst {dimension_numbers = #tpu.dot_dimension_numbers<[1], [1], [0], [0], [0, 0, 1, 0], [], []>} : vector<1x64xf32>, vector<128x64xf32>, vector<1x128xf32> -> vector<1x128xf32>
    %c0_5 = arith.constant 0 : index
    %c0_6 = arith.constant 0 : index
    %5 = vector.load %arg3[%c0_5, %c0_6] : memref<32x64xf32, #tpu.memory_space<vmem>>, vector<32x64xf32>
    %cst_7 = arith.constant dense<0.000000e+00> : vector<32x128xf32>
    %6 = tpu.matmul %5, %0, %cst_7 {dimension_numbers = #tpu.dot_dimension_numbers<[1], [1], [0], [0], [0, 0, 1, 0], [], []>} : vector<32x64xf32>, vector<128x64xf32>, vector<32x128xf32> -> vector<32x128xf32>
    %c0_8 = arith.constant 0 : index
    %c0_9 = arith.constant 0 : index
    %7 = vector.load %arg4[%c0_8, %c0_9] : memref<32x64xf32, #tpu.memory_space<vmem>>, vector<32x64xf32>
    %cst_10 = arith.constant dense<0.000000e+00> : vector<32x128xf32>
    %8 = tpu.matmul %7, %1, %cst_10 {dimension_numbers = #tpu.dot_dimension_numbers<[1], [1], [0], [0], [0, 0, 1, 0], [], []>} : vector<32x64xf32>, vector<128x64xf32>, vector<32x128xf32> -> vector<32x128xf32>
    %9 = arith.addf %6, %8 : vector<32x128xf32>
    %c0_11 = arith.constant 0 : index
    %c0_12 = arith.constant 0 : index
    %10 = vector.load %arg5[%c0_11, %c0_12] : memref<32x1xf32, #tpu.memory_space<vmem>>, vector<32x1xf32>
    %11 = vector.broadcast %10 : vector<32x1xf32> to vector<32x128xf32>
    %12 = arith.addf %9, %11 : vector<32x128xf32>
    %cst_13 = arith.constant 0.000000e+00 : f32
    %13 = vector.broadcast %cst_13 : f32 to vector<32x128xf32>
    %14 = arith.maximumf %12, %13 : vector<32x128xf32>
    %c0_14 = arith.constant 0 : index
    %c0_15 = arith.constant 0 : index
    %15 = vector.load %arg6[%c0_14, %c0_15] : memref<16x32xf32, #tpu.memory_space<vmem>>, vector<16x32xf32>
    %cst_16 = arith.constant dense<0.000000e+00> : vector<16x128xf32>
    %16 = tpu.matmul %15, %14, %cst_16 {dimension_numbers = #tpu.dot_dimension_numbers<[1], [0], [0], [1], [0, 0, 1, 1], [], []>} : vector<16x32xf32>, vector<32x128xf32>, vector<16x128xf32> -> vector<16x128xf32>
    %c0_17 = arith.constant 0 : index
    %c0_18 = arith.constant 0 : index
    %17 = vector.load %arg7[%c0_17, %c0_18] : memref<16x1xf32, #tpu.memory_space<vmem>>, vector<16x1xf32>
    %18 = vector.broadcast %17 : vector<16x1xf32> to vector<16x128xf32>
    %19 = arith.addf %16, %18 : vector<16x128xf32>
    %cst_19 = arith.constant 0.000000e+00 : f32
    %20 = vector.broadcast %cst_19 : f32 to vector<16x128xf32>
    %21 = arith.maximumf %19, %20 : vector<16x128xf32>
    %c0_20 = arith.constant 0 : index
    %c0_21 = arith.constant 0 : index
    %22 = vector.load %arg8[%c0_20, %c0_21] : memref<8x16xf32, #tpu.memory_space<vmem>>, vector<8x16xf32>
    %cst_22 = arith.constant dense<0.000000e+00> : vector<8x128xf32>
    %23 = tpu.matmul %22, %21, %cst_22 {dimension_numbers = #tpu.dot_dimension_numbers<[1], [0], [0], [1], [0, 0, 1, 1], [], []>} : vector<8x16xf32>, vector<16x128xf32>, vector<8x128xf32> -> vector<8x128xf32>
    %c0_23 = arith.constant 0 : index
    %c0_24 = arith.constant 0 : index
    %24 = vector.load %arg9[%c0_23, %c0_24] : memref<8x1xf32, #tpu.memory_space<vmem>>, vector<8x1xf32>
    %25 = vector.broadcast %24 : vector<8x1xf32> to vector<8x128xf32>
    %26 = arith.addf %23, %25 : vector<8x128xf32>
    %cst_25 = arith.constant 0.000000e+00 : f32
    %27 = vector.broadcast %cst_25 : f32 to vector<8x128xf32>
    %28 = arith.maximumf %26, %27 : vector<8x128xf32>
    %c0_26 = arith.constant 0 : index
    %c0_27 = arith.constant 0 : index
    %29 = vector.load %arg11[%c0_26, %c0_27] : memref<8x1xf32, #tpu.memory_space<vmem>>, vector<8x1xf32>
    %30 = vector.broadcast %29 : vector<8x1xf32> to vector<8x128xf32>
    %31 = arith.mulf %28, %30 : vector<8x128xf32>
    %cst_28 = arith.constant dense<0.000000e+00> : vector<128xf32>
    %32 = vector.multi_reduction <add>, %31, %cst_28 [0] : vector<8x128xf32> to vector<128xf32>
    %33 = vector.shape_cast %32 : vector<128xf32> to vector<1x128xf32>
    %34 = arith.addf %4, %33 : vector<1x128xf32>
    %c0_29 = arith.constant 0 : index
    %c0_30 = arith.constant 0 : index
    %35 = vector.load %arg12[%c0_29, %c0_30] : memref<1x1xf32, #tpu.memory_space<vmem>>, vector<1x1xf32>
    %36 = vector.broadcast %35 : vector<1x1xf32> to vector<1x128xf32>
    %37 = arith.addf %34, %36 : vector<1x128xf32>
    %38 = arith.negf %37 : vector<1x128xf32>
    %39 = math.exp %38 : vector<1x128xf32>
    %cst_31 = arith.constant 1.000000e+00 : f32
    %40 = vector.broadcast %cst_31 : f32 to vector<1x128xf32>
    %41 = arith.addf %40, %39 : vector<1x128xf32>
    %42 = arith.divf %40, %41 : vector<1x128xf32>
    %c0_32 = arith.constant 0 : index
    %c0_33 = arith.constant 0 : index
    %43 = vector.load %arg13[%c0_32, %c0_33] : memref<1x128xf32, #tpu.memory_space<vmem>>, vector<1x128xf32>
    tpu.vector_store %arg13[%c0_32, %c0_33], %42 {strides = array<i32>} : memref<1x128xf32, #tpu.memory_space<vmem>>, vector<1x128xf32>,
    return
  }
  func.func @transform_0(%arg0: i32) -> (i32, i32) {
    %c0_i32 = arith.constant 0 : i32
    %c0_i32_0 = arith.constant 0 : i32
    return %arg0, %c0_i32 : i32, i32
  }
  func.func @transform_1(%arg0: i32) -> (i32, i32) {
    %c0_i32 = arith.constant 0 : i32
    %c0_i32_0 = arith.constant 0 : i32
    return %arg0, %c0_i32 : i32, i32
  }
  func.func @transform_2(%arg0: i32) -> (i32, i32) {
    %c0_i32 = arith.constant 0 : i32
    %c0_i32_0 = arith.constant 0 : i32
    %c0_i32_1 = arith.constant 0 : i32
    return %c0_i32, %c0_i32_0 : i32, i32
  }
  func.func @transform_3(%arg0: i32) -> (i32, i32) {
    %c0_i32 = arith.constant 0 : i32
    %c0_i32_0 = arith.constant 0 : i32
    %c0_i32_1 = arith.constant 0 : i32
    return %c0_i32, %c0_i32_0 : i32, i32
  }
  func.func @transform_4(%arg0: i32) -> (i32, i32) {
    %c0_i32 = arith.constant 0 : i32
    %c0_i32_0 = arith.constant 0 : i32
    %c0_i32_1 = arith.constant 0 : i32
    return %c0_i32, %c0_i32_0 : i32, i32
  }
  func.func @transform_5(%arg0: i32) -> (i32, i32) {
    %c0_i32 = arith.constant 0 : i32
    %c0_i32_0 = arith.constant 0 : i32
    %c0_i32_1 = arith.constant 0 : i32
    return %c0_i32, %c0_i32_0 : i32, i32
  }
  func.func @transform_6(%arg0: i32) -> (i32, i32) {
    %c0_i32 = arith.constant 0 : i32
    %c0_i32_0 = arith.constant 0 : i32
    %c0_i32_1 = arith.constant 0 : i32
    return %c0_i32, %c0_i32_0 : i32, i32
  }
  func.func @transform_7(%arg0: i32) -> (i32, i32) {
    %c0_i32 = arith.constant 0 : i32
    %c0_i32_0 = arith.constant 0 : i32
    %c0_i32_1 = arith.constant 0 : i32
    return %c0_i32, %c0_i32_0 : i32, i32
  }
  func.func @transform_8(%arg0: i32) -> (i32, i32) {
    %c0_i32 = arith.constant 0 : i32
    %c0_i32_0 = arith.constant 0 : i32
    %c0_i32_1 = arith.constant 0 : i32
    return %c0_i32, %c0_i32_0 : i32, i32
  }
  func.func @transform_9(%arg0: i32) -> (i32, i32) {
    %c0_i32 = arith.constant 0 : i32
    %c0_i32_0 = arith.constant 0 : i32
    %c0_i32_1 = arith.constant 0 : i32
    return %c0_i32, %c0_i32_0 : i32, i32
  }
  func.func @transform_10(%arg0: i32) -> (i32, i32) {
    %c0_i32 = arith.constant 0 : i32
    %c0_i32_0 = arith.constant 0 : i32
    %c0_i32_1 = arith.constant 0 : i32
    return %c0_i32, %c0_i32_0 : i32, i32
  }
  func.func @transform_11(%arg0: i32) -> (i32, i32) {
    %c0_i32 = arith.constant 0 : i32
    %c0_i32_0 = arith.constant 0 : i32
    %c0_i32_1 = arith.constant 0 : i32
    return %c0_i32, %c0_i32_0 : i32, i32
  }
  func.func @transform_12(%arg0: i32) -> (i32, i32) {
    %c0_i32 = arith.constant 0 : i32
    %c0_i32_0 = arith.constant 0 : i32
    return %c0_i32, %arg0 : i32, i32
  }
}

</mosaic_0001>

<llo_original>
// kernel: tpu_custom_call.1
$region0: #{tpu_custom_call.1}
  #allocation0 [shape = 'u32[]', space=smem, size = 0x4, offset = 0x4, fixed_abs, tag = 'smem constant byte address 0x4 - core index']
  #allocation1 [shape = 'u32[72,128]{1,0:T(1,128)}', space=vmem, size = 0x9000, scoped, tag = 'internal scratch']
  #allocation2 [shape = 'f32[1,1]{1,0:T(1,128)S(1)}', space=vmem, size = 0x200, scoped, tag = 'scoped memory for tpu_custom_call.1']
  %s0 = inlined_call_operand.vmem [shape: f32[128,64], index: 0, kind: input, shape index: {}]
  %s1 = inlined_call_operand.vmem [shape: f32[128,64], index: 1, kind: input, shape index: {}]
  %s2 = inlined_call_operand.vmem [shape: f32[32,64], index: 2, kind: input, shape index: {}]
  %s3 = inlined_call_operand.vmem [shape: f32[32,64], index: 3, kind: input, shape index: {}]
  %s4 = inlined_call_operand.vmem [shape: f32[32,1], index: 4, kind: input, shape index: {}]
  %s5 = inlined_call_operand.vmem [shape: f32[16,32], index: 5, kind: input, shape index: {}]
  %s6 = inlined_call_operand.vmem [shape: f32[16,1], index: 6, kind: input, shape index: {}]
  %s7 = inlined_call_operand.vmem [shape: f32[8,16], index: 7, kind: input, shape index: {}]
  %s8 = inlined_call_operand.vmem [shape: f32[8,1], index: 8, kind: input, shape index: {}]
  %s9 = inlined_call_operand.vmem [shape: f32[1,64], index: 9, kind: input, shape index: {}]
  %s10 = inlined_call_operand.vmem [shape: f32[8,1], index: 10, kind: input, shape index: {}]
  %s11 = inlined_call_operand.<no memory space> [shape: f32[1,1], index: 11, kind: input, shape index: {}]
  %s12 = inlined_call_operand.hbm [shape: f32[1,128], index: 12, kind: output, shape index: {}]
  %s13 = sld [smem:[#allocation0]]
  $region58: #{tpu_custom_call.1} parent=0
    _
  %s15 = ssub.s32 1, %s13
  %s16 = scalar_select 0, %s15, %s13
  %v17 = vstv %s11
  %18 = vst [vmem:[#allocation2] sm:$0x1] %v17
  $region1: #{tpu_custom_call.1} parent=0
    #allocation3 [shape = 'u8[512]{0}', space=vmem, size = 0x400, scoped, tag = 'output window, operand 0, single buffered']
    #allocation4 [shape = 's32[1]{0}', space=sflag, size = 0x4, scoped, tag = 'scoped memory for tpu_custom_call.1']
    %19 = vsyncpa [#allocation4], 0
    // Predicated region
    $region2: #{tpu_custom_call.1} parent=1 // pred_check
      _
    $region3: #{tpu_custom_call.1} parent=1 // pred_check_branch
      %21 = sbr.rel (0) target = $region5
    $region4: #{tpu_custom_call.1} parent=1 // pred_region
      _
    $region5: #{tpu_custom_call.1} parent=1 // pred_fallthru
      _
    // Predicated region
    $region6: #{tpu_custom_call.1} parent=1 // pred_check
      _
    $region7: #{tpu_custom_call.1} parent=1 // pred_check_branch
      %23 = sbr.rel (0) target = $region9
    $region8: #{tpu_custom_call.1} parent=1 // pred_region
      _
    $region9: #{tpu_custom_call.1} parent=1 // pred_fallthru
      _
    // Predicated region
    $region10: #{tpu_custom_call.1} parent=1 // pred_check
      _
    $region11: #{tpu_custom_call.1} parent=1 // pred_check_branch
      %25 = sbr.rel (0) target = $region13
    $region12: #{tpu_custom_call.1} parent=1 // pred_region
      _
    $region13: #{tpu_custom_call.1} parent=1 // pred_fallthru
      _
    // Predicated region
    $region14: #{tpu_custom_call.1} parent=1 // pred_check
      _
    $region15: #{tpu_custom_call.1} parent=1 // pred_check_branch
      %27 = sbr.rel (0) target = $region17
    $region16: #{tpu_custom_call.1} parent=1 // pred_region
      _
    $region17: #{tpu_custom_call.1} parent=1 // pred_fallthru
      _
    // Predicated region
    $region18: #{tpu_custom_call.1} parent=1 // pred_check
      _
    $region19: #{tpu_custom_call.1} parent=1 // pred_check_branch
      %29 = sbr.rel (0) target = $region21
    $region20: #{tpu_custom_call.1} parent=1 // pred_region
      _
    $region21: #{tpu_custom_call.1} parent=1 // pred_fallthru
      _
    // Predicated region
    $region22: #{tpu_custom_call.1} parent=1 // pred_check
      _
    $region23: #{tpu_custom_call.1} parent=1 // pred_check_branch
      %31 = sbr.rel (0) target = $region25
    $region24: #{tpu_custom_call.1} parent=1 // pred_region
      _
    $region25: #{tpu_custom_call.1} parent=1 // pred_fallthru
      _
    // Predicated region
    $region26: #{tpu_custom_call.1} parent=1 // pred_check
      _
    $region27: #{tpu_custom_call.1} parent=1 // pred_check_branch
      %33 = sbr.rel (0) target = $region29
    $region28: #{tpu_custom_call.1} parent=1 // pred_region
      _
    $region29: #{tpu_custom_call.1} parent=1 // pred_fallthru
      _
    // Predicated region
    $region30: #{tpu_custom_call.1} parent=1 // pred_check
      _
    $region31: #{tpu_custom_call.1} parent=1 // pred_check_branch
      %35 = sbr.rel (0) target = $region33
    $region32: #{tpu_custom_call.1} parent=1 // pred_region
      _
    $region33: #{tpu_custom_call.1} parent=1 // pred_fallthru
      _
    // Predicated region
    $region34: #{tpu_custom_call.1} parent=1 // pred_check
      _
    $region35: #{tpu_custom_call.1} parent=1 // pred_check_branch
      %37 = sbr.rel (0) target = $region37
    $region36: #{tpu_custom_call.1} parent=1 // pred_region
      _
    $region37: #{tpu_custom_call.1} parent=1 // pred_fallthru
      _
    // Predicated region
    $region38: #{tpu_custom_call.1} parent=1 // pred_check
      _
    $region39: #{tpu_custom_call.1} parent=1 // pred_check_branch
      %39 = sbr.rel (0) target = $region41
    $region40: #{tpu_custom_call.1} parent=1 // pred_region
      _
    $region41: #{tpu_custom_call.1} parent=1 // pred_fallthru
      _
    // Predicated region
    $region42: #{tpu_custom_call.1} parent=1 // pred_check
      _
    $region43: #{tpu_custom_call.1} parent=1 // pred_check_branch
      %41 = sbr.rel (0) target = $region45
    $region44: #{tpu_custom_call.1} parent=1 // pred_region
      _
    $region45: #{tpu_custom_call.1} parent=1 // pred_fallthru
      _
    // Predicated region
    $region46: #{tpu_custom_call.1} parent=1 // pred_check
      _
    $region47: #{tpu_custom_call.1} parent=1 // pred_check_branch
      %43 = sbr.rel (0) target = $region49
    $region48: #{tpu_custom_call.1} parent=1 // pred_region
      _
    $region49: #{tpu_custom_call.1} parent=1 // pred_fallthru
      _
    %v44 = vld [vmem:[%s0] sm:$0xff]
    %v45 = vld [vmem:[%s0 + $0x8] sm:$0xff]
    %v46 = vld [vmem:[%s0 + $0x10] sm:$0xff]
    %v47 = vld [vmem:[%s0 + $0x18] sm:$0xff]
    %v48 = vld [vmem:[%s0 + $0x20] sm:$0xff]
    %v49 = vld [vmem:[%s0 + $0x28] sm:$0xff]
    %v50 = vld [vmem:[%s0 + $0x30] sm:$0xff]
    %v51 = vld [vmem:[%s0 + $0x38] sm:$0xff]
    %v52 = vld [vmem:[%s0 + $0x40] sm:$0xff]
    %v53 = vld [vmem:[%s0 + $0x48] sm:$0xff]
    %v54 = vld [vmem:[%s0 + $0x50] sm:$0xff]
    %v55 = vld [vmem:[%s0 + $0x58] sm:$0xff]
    %v56 = vld [vmem:[%s0 + $0x60] sm:$0xff]
    %v57 = vld [vmem:[%s0 + $0x68] sm:$0xff]
    %v58 = vld [vmem:[%s0 + $0x70] sm:$0xff]
    %v59 = vld [vmem:[%s0 + $0x78] sm:$0xff]
    %v60 = vld [vmem:[%s1] sm:$0xff]
    %v61 = vld [vmem:[%s1 + $0x8] sm:$0xff]
    %v62 = vld [vmem:[%s1 + $0x10] sm:$0xff]
    %v63 = vld [vmem:[%s1 + $0x18] sm:$0xff]
    %v64 = vld [vmem:[%s1 + $0x20] sm:$0xff]
    %v65 = vld [vmem:[%s1 + $0x28] sm:$0xff]
    %v66 = vld [vmem:[%s1 + $0x30] sm:$0xff]
    %v67 = vld [vmem:[%s1 + $0x38] sm:$0xff]
    %v68 = vld [vmem:[%s1 + $0x40] sm:$0xff]
    %v69 = vld [vmem:[%s1 + $0x48] sm:$0xff]
    %v70 = vld [vmem:[%s1 + $0x50] sm:$0xff]
    %v71 = vld [vmem:[%s1 + $0x58] sm:$0xff]
    %v72 = vld [vmem:[%s1 + $0x60] sm:$0xff]
    %v73 = vld [vmem:[%s1 + $0x68] sm:$0xff]
    %v74 = vld [vmem:[%s1 + $0x70] sm:$0xff]
    %v75 = vld [vmem:[%s1 + $0x78] sm:$0xff]
    %v76 = vmul.f32 %v44, %v60
    %v77 = vmul.f32 %v45, %v61
    %v78 = vmul.f32 %v46, %v62
    %v79 = vmul.f32 %v47, %v63
    %v80 = vmul.f32 %v48, %v64
    %v81 = vmul.f32 %v49, %v65
    %v82 = vmul.f32 %v50, %v66
    %v83 = vmul.f32 %v51, %v67
    %v84 = vmul.f32 %v52, %v68
    %v85 = vmul.f32 %v53, %v69
    %v86 = vmul.f32 %v54, %v70
    %v87 = vmul.f32 %v55, %v71
    %v88 = vmul.f32 %v56, %v72
    %v89 = vmul.f32 %v57, %v73
    %v90 = vmul.f32 %v58, %v74
    %v91 = vmul.f32 %v59, %v75
    %v92 = vld [vmem:[%s9] sm:$0x1]
    %v93 = vld [vmem:[%s2] sm:$0xff]
    %v94 = vld [vmem:[%s2 + $0x8] sm:$0xff]
    %v95 = vld [vmem:[%s2 + $0x10] sm:$0xff]
    %v96 = vld [vmem:[%s2 + $0x18] sm:$0xff]
    %v97 = vld [vmem:[%s3] sm:$0xff]
    %v98 = vld [vmem:[%s3 + $0x8] sm:$0xff]
    %v99 = vld [vmem:[%s3 + $0x10] sm:$0xff]
    %v100 = vld [vmem:[%s3 + $0x18] sm:$0xff]
    %vm101 = vcmask 523264
    %v103 = vsel %vm101, %v97, 0
    %v106 = vsel %vm101, %v98, 0
    %v109 = vsel %vm101, %v99, 0
    %v112 = vsel %vm101, %v100, 0
    %v115 = vsel %vm101, %v60, 0
    %v118 = vsel %vm101, %v61, 0
    %v121 = vsel %vm101, %v62, 0
    %v124 = vsel %vm101, %v63, 0
    %v127 = vsel %vm101, %v64, 0
    %v130 = vsel %vm101, %v65, 0
    %v133 = vsel %vm101, %v66, 0
    %v136 = vsel %vm101, %v67, 0
    %v139 = vsel %vm101, %v68, 0
    %v142 = vsel %vm101, %v69, 0
    %v145 = vsel %vm101, %v70, 0
    %v148 = vsel %vm101, %v71, 0
    %v151 = vsel %vm101, %v72, 0
    %v154 = vsel %vm101, %v73, 0
    %v157 = vsel %vm101, %v74, 0
    %v160 = vsel %vm101, %v75, 0
    %162 = vmatpush.xpose.msra.mxu0 %v160
    %163 = vmatpush.xpose.msra.mxu0 %v157
    %164 = vmatpush.xpose.msra.mxu0 %v154
    %165 = vmatpush.xpose.msra.mxu0 %v151
    %166 = vmatpush.xpose.msra.mxu0 %v148
    %167 = vmatpush.xpose.msra.mxu0 %v145
    %168 = vmatpush.xpose.msra.mxu0 %v142
    %169 = vmatpush.xpose.msra.mxu0 %v139
    %170 = vmatpush.xpose.msra.mxu0 %v136
    %171 = vmatpush.xpose.msra.mxu0 %v133
    %172 = vmatpush.xpose.msra.mxu0 %v130
    %173 = vmatpush.xpose.msra.mxu0 %v127
    %174 = vmatpush.xpose.msra.mxu0 %v124
    %175 = vmatpush.xpose.msra.mxu0 %v121
    %176 = vmatpush.xpose.msra.mxu0 %v118
    %177 = vmatpush.xpose.msra.mxu0 %v115
    %178 = vmatmul.f32.gmra.mxu0 %v103
    %v179 = vpop.f32.mrf.mxu0
    %v180 = vadd.f32 0.0, %v179
    %181 = vmatmul.f32.gmra.mxu0 %v106
    %v182 = vpop.f32.mrf.mxu0
    %v183 = vadd.f32 0.0, %v182
    %184 = vmatmul.f32.gmra.mxu0 %v109
    %v185 = vpop.f32.mrf.mxu0
    %v186 = vadd.f32 0.0, %v185
    %187 = vmatmul.f32.gmra.mxu0 %v112
    %v188 = vpop.f32.mrf.mxu0
    %v189 = vadd.f32 0.0, %v188
    %190 = vdwg.mxu0
    %v192 = vsel %vm101, %v93, 0
    %v195 = vsel %vm101, %v94, 0
    %v198 = vsel %vm101, %v95, 0
    %v201 = vsel %vm101, %v96, 0
    %v204 = vsel %vm101, %v44, 0
    %v207 = vsel %vm101, %v45, 0
    %v210 = vsel %vm101, %v46, 0
    %v213 = vsel %vm101, %v47, 0
    %v216 = vsel %vm101, %v48, 0
    %v219 = vsel %vm101, %v49, 0
    %v222 = vsel %vm101, %v50, 0
    %v225 = vsel %vm101, %v51, 0
    %v228 = vsel %vm101, %v52, 0
    %v231 = vsel %vm101, %v53, 0
    %v234 = vsel %vm101, %v54, 0
    %v237 = vsel %vm101, %v55, 0
    %v240 = vsel %vm101, %v56, 0
    %v243 = vsel %vm101, %v57, 0
    %v246 = vsel %vm101, %v58, 0
    %v249 = vsel %vm101, %v59, 0
    %251 = vmatpush.xpose.msra.mxu0 %v249
    %252 = vmatpush.xpose.msra.mxu0 %v246
    %253 = vmatpush.xpose.msra.mxu0 %v243
    %254 = vmatpush.xpose.msra.mxu0 %v240
    %255 = vmatpush.xpose.msra.mxu0 %v237
    %256 = vmatpush.xpose.msra.mxu0 %v234
    %257 = vmatpush.xpose.msra.mxu0 %v231
    %258 = vmatpush.xpose.msra.mxu0 %v228
    %259 = vmatpush.xpose.msra.mxu0 %v225
    %260 = vmatpush.xpose.msra.mxu0 %v222
    %261 = vmatpush.xpose.msra.mxu0 %v219
    %262 = vmatpush.xpose.msra.mxu0 %v216
    %263 = vmatpush.xpose.msra.mxu0 %v213
    %264 = vmatpush.xpose.msra.mxu0 %v210
    %265 = vmatpush.xpose.msra.mxu0 %v207
    %266 = vmatpush.xpose.msra.mxu0 %v204
    %267 = vmatmul.f32.gmra.mxu0 %v192
    %v268 = vpop.f32.mrf.mxu0
    %v269 = vadd.f32 %v180, %v268
    %270 = vmatmul.f32.gmra.mxu0 %v195
    %v271 = vpop.f32.mrf.mxu0
    %v272 = vadd.f32 %v183, %v271
    %273 = vmatmul.f32.gmra.mxu0 %v198
    %v274 = vpop.f32.mrf.mxu0
    %v275 = vadd.f32 %v186, %v274
    %276 = vmatmul.f32.gmra.mxu0 %v201
    %v277 = vpop.f32.mrf.mxu0
    %v278 = vadd.f32 %v189, %v277
    %279 = vdwg.mxu0
    %v280 = vld [vmem:[%s4] sm:$0xff]
    %v281 = vld [vmem:[%s4 + $0x8] sm:$0xff]
    %v282 = vld [vmem:[%s4 + $0x10] sm:$0xff]
    %v283 = vld [vmem:[%s4 + $0x18] sm:$0xff]
    %285 = vset.pattern.permute.xlu0 0
    %286 = vperm.xlu0 %285, %v280
    %v287 = vpop.permute.xlu0 %286
    %290 = vset.pattern.permute.xlu0 0
    %291 = vperm.xlu0 %290, %v281
    %v292 = vpop.permute.xlu0 %291
    %295 = vset.pattern.permute.xlu0 0
    %296 = vperm.xlu0 %295, %v282
    %v297 = vpop.permute.xlu0 %296
    %300 = vset.pattern.permute.xlu0 0
    %301 = vperm.xlu0 %300, %v283
    %v302 = vpop.permute.xlu0 %301
    %v304 = vadd.f32 %v269, %v287
    %v305 = vadd.f32 %v272, %v292
    %v306 = vadd.f32 %v275, %v297
    %v307 = vadd.f32 %v278, %v302
    %v308 = vmax.f32 %v304, 0.0
    %v309 = vmax.f32 %v305, 0.0
    %v310 = vmax.f32 %v306, 0.0
    %v311 = vmax.f32 %v307, 0.0
    %v312 = vld [vmem:[%s5] sm:$0xff]
    %v313 = vld [vmem:[%s5 + $0x8] sm:$0xff]
    %v314 = vld [vmem:[%s6] sm:$0xff]
    %v315 = vld [vmem:[%s6 + $0x8] sm:$0xff]
    %317 = vset.pattern.permute.xlu0 0
    %318 = vperm.xlu0 %317, %v314
    %v319 = vpop.permute.xlu0 %318
    %322 = vset.pattern.permute.xlu0 0
    %323 = vperm.xlu0 %322, %v315
    %v324 = vpop.permute.xlu0 %323
    %vm326 = vcmask 261120
    %v328 = vsel %vm326, %v312, 0
    %v331 = vsel %vm326, %v313, 0
    %333 = vmatpush.msra.mxu0 0.0
    %334 = vmatpush.msra.mxu0 0.0
    %335 = vmatpush.msra.mxu0 0.0
    %336 = vmatpush.msra.mxu0 0.0
    %337 = vmatpush.msra.mxu0 0.0
    %338 = vmatpush.msra.mxu0 0.0
    %339 = vmatpush.msra.mxu0 0.0
    %340 = vmatpush.msra.mxu0 0.0
    %341 = vmatpush.msra.mxu0 0.0
    %342 = vmatpush.msra.mxu0 0.0
    %343 = vmatpush.msra.mxu0 0.0
    %344 = vmatpush.msra.mxu0 0.0
    %345 = vmatpush.msra.mxu0 %v311
    %346 = vmatpush.msra.mxu0 %v310
    %347 = vmatpush.msra.mxu0 %v309
    %348 = vmatpush.msra.mxu0 %v308
    %349 = vmatmul.f32.gmra.mxu0 %v328
    %v350 = vpop.f32.mrf.mxu0
    %v351 = vadd.f32 %v319, %v350
    %352 = vmatmul.f32.gmra.mxu0 %v331
    %v353 = vpop.f32.mrf.mxu0
    %v354 = vadd.f32 %v324, %v353
    %355 = vdwg.mxu0
    %v356 = vmax.f32 %v351, 0.0
    %v357 = vmax.f32 %v354, 0.0
    %v358 = vld [vmem:[%s7] sm:$0xff]
    %v359 = vld [vmem:[%s8] sm:$0xff]
    %361 = vset.pattern.permute.xlu0 0
    %362 = vperm.xlu0 %361, %v359
    %v363 = vpop.permute.xlu0 %362
    %vm365 = vcmask 130048
    %v367 = vsel %vm365, %v358, 0
    %369 = vmatpush.msra.mxu0 0.0
    %370 = vmatpush.msra.mxu0 0.0
    %371 = vmatpush.msra.mxu0 0.0
    %372 = vmatpush.msra.mxu0 0.0
    %373 = vmatpush.msra.mxu0 0.0
    %374 = vmatpush.msra.mxu0 0.0
    %375 = vmatpush.msra.mxu0 0.0
    %376 = vmatpush.msra.mxu0 0.0
    %377 = vmatpush.msra.mxu0 0.0
    %378 = vmatpush.msra.mxu0 0.0
    %379 = vmatpush.msra.mxu0 0.0
    %380 = vmatpush.msra.mxu0 0.0
    %381 = vmatpush.msra.mxu0 0.0
    %382 = vmatpush.msra.mxu0 0.0
    %383 = vmatpush.msra.mxu0 %v357
    %384 = vmatpush.msra.mxu0 %v356
    %385 = vmatmul.f32.gmra.mxu0 %v367
    %v386 = vpop.f32.mrf.mxu0
    %v387 = vadd.f32 %v363, %v386
    %388 = vdwg.mxu0
    %v389 = vmax.f32 %v387, 0.0
    %v390 = vld [vmem:[%s10] sm:$0xff]
    %392 = vset.pattern.permute.xlu0 0
    %393 = vperm.xlu0 %392, %v390
    %v394 = vpop.permute.xlu0 %393
    %v396 = vmul.f32 %v389, %v394
    %v397 = vrot.slane %v396, 4
    %v398 = vadd.f32 %v396, %v397
    %v399 = vrot.slane %v398, 2
    %v400 = vadd.f32 %v398, %v399
    %v401 = vrot.slane %v400, 1
    %v402 = vadd.f32 %v400, %v401
    %v404 = vsel %vm101, %v92, 0
    %v407 = vsel %vm101, %v76, 0
    %v410 = vsel %vm101, %v77, 0
    %v413 = vsel %vm101, %v78, 0
    %v416 = vsel %vm101, %v79, 0
    %v419 = vsel %vm101, %v80, 0
    %v422 = vsel %vm101, %v81, 0
    %v425 = vsel %vm101, %v82, 0
    %v428 = vsel %vm101, %v83, 0
    %v431 = vsel %vm101, %v84, 0
    %v434 = vsel %vm101, %v85, 0
    %v437 = vsel %vm101, %v86, 0
    %v440 = vsel %vm101, %v87, 0
    %v443 = vsel %vm101, %v88, 0
    %v446 = vsel %vm101, %v89, 0
    %v449 = vsel %vm101, %v90, 0
    %v452 = vsel %vm101, %v91, 0
    %454 = vmatpush.xpose.msra.mxu0 %v452
    %455 = vmatpush.xpose.msra.mxu0 %v449
    %456 = vmatpush.xpose.msra.mxu0 %v446
    %457 = vmatpush.xpose.msra.mxu0 %v443
    %458 = vmatpush.xpose.msra.mxu0 %v440
    %459 = vmatpush.xpose.msra.mxu0 %v437
    %460 = vmatpush.xpose.msra.mxu0 %v434
    %461 = vmatpush.xpose.msra.mxu0 %v431
    %462 = vmatpush.xpose.msra.mxu0 %v428
    %463 = vmatpush.xpose.msra.mxu0 %v425
    %464 = vmatpush.xpose.msra.mxu0 %v422
    %465 = vmatpush.xpose.msra.mxu0 %v419
    %466 = vmatpush.xpose.msra.mxu0 %v416
    %467 = vmatpush.xpose.msra.mxu0 %v413
    %468 = vmatpush.xpose.msra.mxu0 %v410
    %469 = vmatpush.xpose.msra.mxu0 %v407
    %470 = vmatmul.f32.gmra.mxu0 %v404
    %v471 = vpop.f32.mrf.mxu0
    %v472 = vadd.f32 %v402, %v471
    %473 = vdwg.mxu0
    %v474 = vld [vmem:[#allocation2] sm:$0x1]
    %476 = vset.pattern.permute.xlu0 0
    %477 = vperm.xlu0 %476, %v474
    %v478 = vpop.permute.xlu0 %477
    %v480 = vperm.slane %v478, 0
    %v481 = vadd.f32 %v472, %v480
    %v482 = vxor.u32 %v481, 2147483648
    %v483 = vmul.f32 %v482, 1.442695
    %v484 = vpow.pop %v483
    %v485 = vadd.f32 %v484, 1.0
    %v486 = vrcp.pop %v485
    %v487 = vmul.f32 %v485, %v486
    %v488 = vsub.f32 1.0, %v487
    %v489 = vmul.f32 %v486, %v488
    %v490 = vadd.f32 %v486, %v489
    %vm491 = vweird.f32 %v485
    %vm492 = vweird.f32 %v486
    %vm493 = vmor %vm491, %vm492
    %v494 = vsel %vm493, %v486, %v490
    %v495 = vand.u32 2147483647, %v485
    %vm496 = vcmp.eq.f32.partialorder %v495, 8.507059e+37
    %v497 = vand.u32 %v485, 2147483648
    %v498 = vor.u32 1.1754944e-38, %v497
    %v499 = vsel %vm496, %v498, %v494
    %v500 = vmul.f32 1.0, %v499
    %501 = vst [vmem:[#allocation3] sm:$0x1] %v500
    // Predicated region
    $region50: #{tpu_custom_call.1} parent=1 // pred_check
      _
    $region51: #{tpu_custom_call.1} parent=1 // pred_check_branch
      %503 = sbr.rel (0) target = $region53
    $region52: #{tpu_custom_call.1} parent=1 // pred_region
      %505 = vsyncadd [#allocation4], 0
      %s507 = sshll.u32 [#allocation3], 4
      %s508 = int_to_ptr.vmem [resolvable:$true] %s507
      %s509 = sshll.u32 %s12, 4
      %s510 = int_to_ptr.hbm [resolvable:$true] %s509
      %512 = dma.vmem_to_hbm [thread:$0]  %s508, 16, %s510, [#allocation4]
    $region53: #{tpu_custom_call.1} parent=1 // pred_fallthru
      _
    // Predicated region
    $region54: #{tpu_custom_call.1} parent=1 // pred_check
      _
    $region55: #{tpu_custom_call.1} parent=1 // pred_check_branch
      %514 = sbr.rel (0) target = $region57
    $region56: #{tpu_custom_call.1} parent=1 // pred_region
      %516 = dma.done [#allocation4], 16
    $region57: #{tpu_custom_call.1} parent=1 // pred_fallthru
      _
    %517 = vsyncpa [#allocation4], 1

</llo_original>
